<compile_context>
chip_gen: v7x
topology: tpu7x:2x2x1
jax: 0.10.0
libtpu: 0.0.40
codegen_flags: <defaults>
</compile_context>

<pallas_src>
import functools
import math

import jax
import jax.numpy as jnp
from jax.experimental import pallas as pl
from jax.experimental.pallas import tpu as pltpu

LANE = 128


def _round_up(x, m):
    return ((x + m - 1) // m) * m


# ----------------------------------------------------------------------------
# Fused kernel (built per static hidden-layer count / feat-slab width)
# ----------------------------------------------------------------------------
def _make_fused_kernel(n_hidden, f_pad):
    """Hidden Linear+ReLU chain, then one fused head matmul + hard threshold."""

    def kernel(thrd_ref, x_ref, *refs):
        n_param = 2 * n_hidden + 2          # hidden (w,b) pairs + fused head (w,b)
        params = refs[:n_param]
        feat_ref, edge_ref = refs[n_param], refs[n_param + 1]

        h = x_ref[...]
        # Static Python loop over fused hidden layers (each has its own w, b;
        # biases are read once per layer -> no repeated broadcast materialization).
        for l in range(n_hidden):
            w = params[2 * l][...]
            b = params[2 * l + 1][...]
            h = jnp.dot(h, w, preferred_element_type=jnp.float32) + b
            h = jnp.maximum(h, 0.0)

        # Fused feat+edge head: one MXU matmul, then split at a 128-aligned column.
        w_heads = params[2 * n_hidden][...]
        b_heads = params[2 * n_hidden + 1][...]
        y = jnp.dot(h, w_heads, preferred_element_type=jnp.float32) + b_heads

        feat_ref[...] = y[:, :f_pad].astype(feat_ref.dtype)

        thrd = thrd_ref[0, 0]
        edge = y[:, f_pad:]
        # GradWhere forward (hard threshold). Forward-only here.
        # TODO(synk): under autodiff a custom_vjp straight-through estimator is
        # required to match GradWhere.backward; jnp.where has zero gradient.
        edge_ref[...] = jnp.where(edge > thrd,
                                  jnp.float32(1.0),
                                  jnp.float32(0.0)).astype(edge_ref.dtype)

    return kernel


# ----------------------------------------------------------------------------
# Single jitted forward wrapping one pallas_call
# ----------------------------------------------------------------------------
@functools.partial(jax.jit, static_argnames=("n_feat_out", "n_edge_out", "f_pad"))
def _forward(x, thrd, hidden, w_heads, b_heads, *, n_feat_out, n_edge_out, f_pad):
    n, nfeat = x.shape
    e_pad = w_heads.shape[1] - f_pad     # edge slab width (multiple of 128)
    n_hidden = len(hidden)

    # Row tile: at least 8 (sublane granularity), at most 512 (pipelining sweet
    # spot, comfortably within VMEM on v5e..v7x even double-buffered).
    tn = min(512, _round_up(max(n, 1), 8))
    n_pad = _round_up(n, tn)
    if n_pad != n:
        x = jnp.pad(x, ((0, n_pad - n), (0, 0)))
    grid = (n_pad // tn,)

    row_map = lambda i: (i, 0)   # activation/output tiles march down the rows
    pin_map = lambda i: (0, 0)   # weights/biases stay VMEM-resident across tiles
    vmem = pltpu.MemorySpace.VMEM

    in_specs = [
        pl.BlockSpec((1, 1), pin_map, memory_space=pltpu.MemorySpace.SMEM),  # thrd
        pl.BlockSpec((tn, nfeat), row_map, memory_space=vmem),               # x tile
    ]
    params = []
    for (w, b) in hidden:
        params += [w, b]
        in_specs += [pl.BlockSpec(w.shape, pin_map, memory_space=vmem),
                     pl.BlockSpec(b.shape, pin_map, memory_space=vmem)]
    params += [w_heads, b_heads]
    in_specs += [pl.BlockSpec(w_heads.shape, pin_map, memory_space=vmem),
                 pl.BlockSpec(b_heads.shape, pin_map, memory_space=vmem)]

    out_specs = (pl.BlockSpec((tn, f_pad), row_map, memory_space=vmem),
                 pl.BlockSpec((tn, e_pad), row_map, memory_space=vmem))
    out_shape = (jax.ShapeDtypeStruct((n_pad, f_pad), jnp.float32),
                 jax.ShapeDtypeStruct((n_pad, e_pad), jnp.float32))

    # Advisory cost estimate for XLA's scheduler (memory-bound regime).
    flops = int(2 * n_pad * nfeat * (n_hidden * nfeat + f_pad + e_pad))
    bytes_accessed = int(4 * (
        n_pad * nfeat
        + n_pad * (f_pad + e_pad)
        + sum(w.size + b.size for (w, b) in hidden)
        + w_heads.size + b_heads.size))

    thrd_arr = jnp.asarray(thrd, dtype=jnp.float32).reshape(1, 1)

    feat_p, edge_p = pl.pallas_call(
        _make_fused_kernel(n_hidden, f_pad),
        out_shape=out_shape,
        grid=grid,
        in_specs=in_specs,
        out_specs=out_specs,
        compiler_params=pltpu.CompilerParams(
            dimension_semantics=("parallel",),          # shard row tiles across TCs (v7x)
            vmem_limit_bytes=32 * 1024 * 1024),         # explicit budget (safe on v5e..v7x)
        cost_estimate=pl.CostEstimate(flops=flops, transcendentals=0,
                                      bytes_accessed=bytes_accessed),
    )(thrd_arr, x, *params)

    # Slice off row padding and lane padding (padded edge/feat columns are exact
    # zero-weight columns, so dropping them preserves semantics).
    return feat_p[:n, :n_feat_out], edge_p[:n, :n_edge_out]


# ----------------------------------------------------------------------------
# Module wrapper with deterministic parameter init (PyTorch Linear default:
# U(-1/sqrt(fan_in), +1/sqrt(fan_in)) for both weight and bias).
# ----------------------------------------------------------------------------
class GraphTrojanNetPallas:
    def __init__(self, key, nfeat, nout, layernum=1, dropout=0.0):
        # TODO(synk): dropout>0 is inference-time identity here (nn.Dropout in eval);
        # training-mode dropout masks are not implemented.
        self.nfeat = nfeat
        self.nout = nout
        self.layernum = layernum
        self.n_feat_out = nout * nfeat
        self.n_edge_out = int(nout * (nout - 1) / 2)

        def init_linear(k, fan_in, fan_out, pad_to=None):
            kw, kb = jax.random.split(k)
            bound = 1.0 / math.sqrt(fan_in)
            # stored as (fan_in, fan_out) == transpose of PyTorch (out, in)
            w = jax.random.uniform(kw, (fan_in, fan_out), jnp.float32,
                                   minval=-bound, maxval=bound)
            b = jax.random.uniform(kb, (1, fan_out), jnp.float32,
                                   minval=-bound, maxval=bound)
            if pad_to is not None and pad_to > fan_out:
                # zero-pad output columns -> lane-dense (multiple of 128) kernel output
                w = jnp.pad(w, ((0, 0), (0, pad_to - fan_out)))
                b = jnp.pad(b, ((0, 0), (0, pad_to - fan_out)))
            return w, b

        keys = jax.random.split(key, layernum + 1)  # (layernum-1) hidden + feat + edge
        self.hidden = [init_linear(keys[l], nfeat, nfeat)
                       for l in range(layernum - 1)]

        self.f_pad = _round_up(self.n_feat_out, LANE)
        self.e_pad = _round_up(self.n_edge_out, LANE)
        wf_p, bf_p = init_linear(keys[layernum - 1], nfeat,
                                 self.n_feat_out, pad_to=self.f_pad)
        we_p, be_p = init_linear(keys[layernum], nfeat,
                                 self.n_edge_out, pad_to=self.e_pad)
        # Fuse the two heads into one weight/bias so the kernel needs a single matmul.
        self.w_heads = jnp.concatenate([wf_p, we_p], axis=1)   # (nfeat, f_pad + e_pad)
        self.b_heads = jnp.concatenate([bf_p, be_p], axis=1)   # (1,     f_pad + e_pad)

    def __call__(self, x, thrd):
        return _forward(x, thrd, self.hidden, self.w_heads, self.b_heads,
                        n_feat_out=self.n_feat_out, n_edge_out=self.n_edge_out,
                        f_pad=self.f_pad)


# ----------------------------------------------------------------------------
# Pure-JAX reference for sanity checking
# ----------------------------------------------------------------------------
def _reference(model, x, thrd):
    h = x
    for w, b in model.hidden:
        h = jnp.maximum(h @ w + b, 0.0)
    wf = model.w_heads[:, :model.n_feat_out]
    bf = model.b_heads[:, :model.n_feat_out]
    we = model.w_heads[:, model.f_pad:model.f_pad + model.n_edge_out]
    be = model.b_heads[:, model.f_pad:model.f_pad + model.n_edge_out]
    feat = h @ wf + bf
    edge = h @ we + be
    edge_weight = jnp.where(edge > thrd, 1.0, 0.0)
    return feat, edge_weight


if __name__ == "__main__":
    key = jax.random.PRNGKey(0)
    k_param, k_param2, k_x = jax.random.split(key, 3)

    N = 8        # number of nodes (rows)
    NFEAT = 32   # node feature dim
    NOUT = 8     # trigger size -> feat dim = 256, edge dim = 28
    thrd = 0.1

    x = jax.random.normal(k_x, (N, NFEAT), dtype=jnp.float32)

    # layernum=2 exercises one fused hidden Linear+ReLU layer.
    model = GraphTrojanNetPallas(k_param, NFEAT, NOUT, layernum=2, dropout=0.0)
    feat, edge_weight = model(x, thrd)
    feat = jax.block_until_ready(feat)
    edge_weight = jax.block_until_ready(edge_weight)
    feat_ref, edge_ref = _reference(model, x, thrd)
    assert feat.shape == (N, NOUT * NFEAT)
    assert edge_weight.shape == (N, NOUT * (NOUT - 1) // 2)
    assert jnp.allclose(feat, feat_ref, atol=1e-4, rtol=1e-4)
    assert jnp.array_equal(edge_weight, edge_ref)

    # layernum=1 exercises the no-hidden-layer (identity) path.
    model1 = GraphTrojanNetPallas(k_param2, NFEAT, NOUT, layernum=1, dropout=0.0)
    feat1, edge1 = model1(x, thrd)
    feat1 = jax.block_until_ready(feat1)
    edge1 = jax.block_until_ready(edge1)
    feat1_ref, edge1_ref = _reference(model1, x, thrd)
    assert jnp.allclose(feat1, feat1_ref, atol=1e-4, rtol=1e-4)
    assert jnp.array_equal(edge1, edge1_ref)

    print("KERNEL_OK")
</pallas_src>

<mosaic_0001>
module attributes {stable_mosaic.version = 11 : i64} {
  func.func @kernel(%arg0: i32, %arg1: memref<1x1xf32, #tpu.memory_space<smem>>, %arg2: memref<8x32xf32, #tpu.memory_space<vmem>>, %arg3: memref<32x32xf32, #tpu.memory_space<vmem>>, %arg4: memref<1x32xf32, #tpu.memory_space<vmem>>, %arg5: memref<32x384xf32, #tpu.memory_space<vmem>>, %arg6: memref<1x384xf32, #tpu.memory_space<vmem>>, %arg7: memref<8x256xf32, #tpu.memory_space<vmem>>, %arg8: memref<8x128xf32, #tpu.memory_space<vmem>>) attributes {dimension_semantics = [#tpu.dimension_semantics<parallel>], iteration_bounds = array<i64: 1>, scalar_prefetch = 0 : i64, scratch_operands = 0 : i64, tpu.core_type = #tpu.core_type<tc>, window_params = [{transform_indices = @transform_0, window_bounds = array<i64: 1, 1>}, {transform_indices = @transform_1, window_bounds = array<i64: 8, 32>}, {pipeline_mode = #tpu.pipeline_mode<synchronous>, transform_indices = @transform_2, window_bounds = array<i64: 32, 32>}, {pipeline_mode = #tpu.pipeline_mode<synchronous>, transform_indices = @transform_3, window_bounds = array<i64: 1, 32>}, {pipeline_mode = #tpu.pipeline_mode<synchronous>, transform_indices = @transform_4, window_bounds = array<i64: 32, 384>}, {pipeline_mode = #tpu.pipeline_mode<synchronous>, transform_indices = @transform_5, window_bounds = array<i64: 1, 384>}, {transform_indices = @transform_6, window_bounds = array<i64: 8, 256>}, {transform_indices = @transform_7, window_bounds = array<i64: 8, 128>}]} {
    %c0 = arith.constant 0 : index
    %c0_0 = arith.constant 0 : index
    %0 = vector.load %arg2[%c0, %c0_0] : memref<8x32xf32, #tpu.memory_space<vmem>>, vector<8x32xf32>
    %c0_1 = arith.constant 0 : index
    %c0_2 = arith.constant 0 : index
    %1 = vector.load %arg3[%c0_1, %c0_2] : memref<32x32xf32, #tpu.memory_space<vmem>>, vector<32x32xf32>
    %c0_3 = arith.constant 0 : index
    %c0_4 = arith.constant 0 : index
    %2 = vector.load %arg4[%c0_3, %c0_4] : memref<1x32xf32, #tpu.memory_space<vmem>>, vector<1x32xf32>
    %cst = arith.constant dense<0.000000e+00> : vector<8x32xf32>
    %3 = tpu.matmul %0, %1, %cst {dimension_numbers = #tpu.dot_dimension_numbers<[1], [0], [0], [1], [0, 0, 1, 1], [], []>} : vector<8x32xf32>, vector<32x32xf32>, vector<8x32xf32> -> vector<8x32xf32>
    %4 = vector.broadcast %2 : vector<1x32xf32> to vector<8x32xf32>
    %5 = arith.addf %3, %4 : vector<8x32xf32>
    %cst_5 = arith.constant 0.000000e+00 : f32
    %6 = vector.broadcast %cst_5 : f32 to vector<8x32xf32>
    %7 = arith.maximumf %5, %6 : vector<8x32xf32>
    %c0_6 = arith.constant 0 : index
    %c0_7 = arith.constant 0 : index
    %8 = vector.load %arg5[%c0_6, %c0_7] : memref<32x384xf32, #tpu.memory_space<vmem>>, vector<32x384xf32>
    %c0_8 = arith.constant 0 : index
    %c0_9 = arith.constant 0 : index
    %9 = vector.load %arg6[%c0_8, %c0_9] : memref<1x384xf32, #tpu.memory_space<vmem>>, vector<1x384xf32>
    %cst_10 = arith.constant dense<0.000000e+00> : vector<8x384xf32>
    %10 = tpu.matmul %7, %8, %cst_10 {dimension_numbers = #tpu.dot_dimension_numbers<[1], [0], [0], [1], [0, 0, 1, 1], [], []>} : vector<8x32xf32>, vector<32x384xf32>, vector<8x384xf32> -> vector<8x384xf32>
    %11 = vector.broadcast %9 : vector<1x384xf32> to vector<8x384xf32>
    %12 = arith.addf %10, %11 : vector<8x384xf32>
    %13 = vector.extract_strided_slice %12 {offsets = [0, 0], sizes = [8, 256], strides = [1, 1]} : vector<8x384xf32> to vector<8x256xf32>
    %c0_11 = arith.constant 0 : index
    %c0_12 = arith.constant 0 : index
    %14 = vector.load %arg7[%c0_11, %c0_12] : memref<8x256xf32, #tpu.memory_space<vmem>>, vector<8x256xf32>
    tpu.vector_store %arg7[%c0_11, %c0_12], %13 {strides = array<i32>} : memref<8x256xf32, #tpu.memory_space<vmem>>, vector<8x256xf32>,
    %c0_13 = arith.constant 0 : index
    %c0_14 = arith.constant 0 : index
    %15 = memref.load %arg1[%c0_13, %c0_14] : memref<1x1xf32, #tpu.memory_space<smem>>
    %16 = vector.extract_strided_slice %12 {offsets = [0, 256], sizes = [8, 128], strides = [1, 1]} : vector<8x384xf32> to vector<8x128xf32>
    %17 = vector.broadcast %15 : f32 to vector<8x128xf32>
    %18 = arith.cmpf ogt, %16, %17 : vector<8x128xf32>
    %cst_15 = arith.constant 1.000000e+00 : f32
    %cst_16 = arith.constant 0.000000e+00 : f32
    %19 = vector.broadcast %cst_15 : f32 to vector<8x128xf32>
    %20 = vector.broadcast %cst_16 : f32 to vector<8x128xf32>
    %21 = arith.select %18, %19, %20 : vector<8x128xi1>, vector<8x128xf32>
    %c0_17 = arith.constant 0 : index
    %c0_18 = arith.constant 0 : index
    %22 = vector.load %arg8[%c0_17, %c0_18] : memref<8x128xf32, #tpu.memory_space<vmem>>, vector<8x128xf32>
    tpu.vector_store %arg8[%c0_17, %c0_18], %21 {strides = array<i32>} : memref<8x128xf32, #tpu.memory_space<vmem>>, vector<8x128xf32>,
    return
  }
  func.func @transform_0(%arg0: i32) -> (i32, i32) {
    %c0_i32 = arith.constant 0 : i32
    %c0_i32_0 = arith.constant 0 : i32
    %c0_i32_1 = arith.constant 0 : i32
    return %c0_i32, %c0_i32_0 : i32, i32
  }
  func.func @transform_1(%arg0: i32) -> (i32, i32) {
    %c0_i32 = arith.constant 0 : i32
    %c0_i32_0 = arith.constant 0 : i32
    return %arg0, %c0_i32 : i32, i32
  }
  func.func @transform_2(%arg0: i32) -> (i32, i32) {
    %c0_i32 = arith.constant 0 : i32
    %c0_i32_0 = arith.constant 0 : i32
    %c0_i32_1 = arith.constant 0 : i32
    return %c0_i32, %c0_i32_0 : i32, i32
  }
  func.func @transform_3(%arg0: i32) -> (i32, i32) {
    %c0_i32 = arith.constant 0 : i32
    %c0_i32_0 = arith.constant 0 : i32
    %c0_i32_1 = arith.constant 0 : i32
    return %c0_i32, %c0_i32_0 : i32, i32
  }
  func.func @transform_4(%arg0: i32) -> (i32, i32) {
    %c0_i32 = arith.constant 0 : i32
    %c0_i32_0 = arith.constant 0 : i32
    %c0_i32_1 = arith.constant 0 : i32
    return %c0_i32, %c0_i32_0 : i32, i32
  }
  func.func @transform_5(%arg0: i32) -> (i32, i32) {
    %c0_i32 = arith.constant 0 : i32
    %c0_i32_0 = arith.constant 0 : i32
    %c0_i32_1 = arith.constant 0 : i32
    return %c0_i32, %c0_i32_0 : i32, i32
  }
  func.func @transform_6(%arg0: i32) -> (i32, i32) {
    %c0_i32 = arith.constant 0 : i32
    %c0_i32_0 = arith.constant 0 : i32
    return %arg0, %c0_i32 : i32, i32
  }
  func.func @transform_7(%arg0: i32) -> (i32, i32) {
    %c0_i32 = arith.constant 0 : i32
    %c0_i32_0 = arith.constant 0 : i32
    return %arg0, %c0_i32 : i32, i32
  }
}

</mosaic_0001>

<llo_original>
// kernel: _forward.1
$region0: #{_forward.1}
  #allocation0 [shape = 'u32[]', space=smem, size = 0x4, offset = 0x4, fixed_abs, tag = 'smem constant byte address 0x4 - core index']
  #allocation1 [shape = 'u32[144,128]{1,0:T(1,128)}', space=vmem, size = 0x12000, scoped, tag = 'internal scratch']
  #allocation2 [shape = 'f32[1,1]{1,0:T(1,128)S(6)}', space=smem, size = 0x200, scoped, tag = 'scoped memory for _forward.1']
  %s0 = inlined_call_operand.<no memory space> [shape: f32[1,1], index: 0, kind: input, shape index: {}]
  %s1 = inlined_call_operand.hbm [shape: f32[8,32], index: 1, kind: input, shape index: {}]
  %s2 = inlined_call_operand.hbm [shape: f32[32,32], index: 2, kind: input, shape index: {}]
  %s3 = inlined_call_operand.vmem [shape: f32[1,32], index: 3, kind: input, shape index: {}]
  %s4 = inlined_call_operand.hbm [shape: f32[32,384], index: 4, kind: input, shape index: {}]
  %s5 = inlined_call_operand.vmem [shape: f32[1,384], index: 5, kind: input, shape index: {}]
  %s6 = inlined_call_operand.hbm [shape: f32[8,256], index: 6, kind: output, shape index: {0}]
  %s7 = inlined_call_operand.hbm [shape: f32[8,128], index: 7, kind: output, shape index: {1}]
  %8 = xla_tuple %s6, %s7
  %s9 = sld [smem:[#allocation0]]
  $region54: #{_forward.1} parent=0
    _
  %s11 = ssub.s32 1, %s9
  %s12 = scalar_select 0, %s11, %s9
  %13 = sst [smem:[#allocation2]] %s0
  $region1: #{_forward.1} parent=0
    #allocation3 [shape = 'u8[4096]{0}', space=vmem, size = 0x1000, scoped, tag = 'input window, operand 1, single buffered']
    #allocation4 [shape = 's32[1]{0}', space=sflag, size = 0x4, scoped, tag = 'scoped memory for _forward.1']
    #allocation5 [shape = 's32[1]{0}', space=sflag, size = 0x4, scoped, tag = 'scoped memory for _forward.1']
    #allocation6 [shape = 'u8[16384]{0}', space=vmem, size = 0x4000, scoped, tag = 'input window, operand 2, single buffered']
    #allocation7 [shape = 's32[1]{0}', space=sflag, size = 0x4, scoped, tag = 'scoped memory for _forward.1']
    #allocation8 [shape = 'u8[49152]{0}', space=vmem, size = 0xc000, scoped, tag = 'input window, operand 4, single buffered']
    #allocation9 [shape = 'u8[8192]{0}', space=vmem, size = 0x2000, scoped, tag = 'output window, operand 0, single buffered']
    #allocation10 [shape = 'u8[4096]{0}', space=vmem, size = 0x1000, scoped, tag = 'output window, operand 1, single buffered']
    #allocation11 [shape = 's32[1]{0}', space=sflag, size = 0x4, scoped, tag = 'scoped memory for _forward.1']
    %14 = vsyncpa [#allocation4], 0
    %15 = vsyncpa [#allocation7], 0
    %16 = vsyncpa [#allocation5], 0
    %17 = vsyncpa [#allocation11], 0
    // Predicated region
    $region2: #{_forward.1} parent=1 // pred_check
      _
    $region3: #{_forward.1} parent=1 // pred_check_branch
      %19 = sbr.rel (0) target = $region5
    $region4: #{_forward.1} parent=1 // pred_region
      _
    $region5: #{_forward.1} parent=1 // pred_fallthru
      _
    // Predicated region
    $region6: #{_forward.1} parent=1 // pred_check
      _
    $region7: #{_forward.1} parent=1 // pred_check_branch
      %21 = sbr.rel (0) target = $region9
    $region8: #{_forward.1} parent=1 // pred_region
      %s23 = ssub.s32 128, 128
      %24 = vsyncadd [#allocation4], %s23
      %s26 = sshll.u32 [#allocation3], 4
      %s27 = int_to_ptr.vmem [resolvable:$true] %s26
      %29 = dma.hbm_to_vmem [thread:$0]  %s1, 128, %s27, [#allocation4]
    $region9: #{_forward.1} parent=1 // pred_fallthru
      _
    // Predicated region
    $region10: #{_forward.1} parent=1 // pred_check
      _
    $region11: #{_forward.1} parent=1 // pred_check_branch
      %31 = sbr.rel (0) target = $region13
    $region12: #{_forward.1} parent=1 // pred_region
      %s33 = ssub.s32 512, 512
      %34 = vsyncadd [#allocation7], %s33
      %s35 = sshll.u32 [#allocation6], 4
      %s36 = int_to_ptr.vmem [resolvable:$true] %s35
      %41 = dma.hbm_to_vmem [thread:$0]  %s2, 512, %s36, [#allocation7], 128, 128, 8
    $region13: #{_forward.1} parent=1 // pred_fallthru
      _
    // Predicated region
    $region14: #{_forward.1} parent=1 // pred_check
      _
    $region15: #{_forward.1} parent=1 // pred_check_branch
      %43 = sbr.rel (0) target = $region17
    $region16: #{_forward.1} parent=1 // pred_region
      _
    $region17: #{_forward.1} parent=1 // pred_fallthru
      _
    // Predicated region
    $region18: #{_forward.1} parent=1 // pred_check
      _
    $region19: #{_forward.1} parent=1 // pred_check_branch
      %45 = sbr.rel (0) target = $region21
    $region20: #{_forward.1} parent=1 // pred_region
      %s47 = ssub.s32 1536, 1536
      %48 = vsyncadd [#allocation7], %s47
      %s49 = sshll.u32 [#allocation8], 4
      %s50 = int_to_ptr.vmem [resolvable:$true] %s49
      %55 = dma.hbm_to_vmem [thread:$0]  %s4, 1536, %s50, [#allocation7], 384, 384, 24
    $region21: #{_forward.1} parent=1 // pred_fallthru
      _
    // Predicated region
    $region22: #{_forward.1} parent=1 // pred_check
      _
    $region23: #{_forward.1} parent=1 // pred_check_branch
      %57 = sbr.rel (0) target = $region25
    $region24: #{_forward.1} parent=1 // pred_region
      _
    $region25: #{_forward.1} parent=1 // pred_fallthru
      _
    // Predicated region
    $region26: #{_forward.1} parent=1 // pred_check
      _
    $region27: #{_forward.1} parent=1 // pred_check_branch
      %59 = sbr.rel (0) target = $region29
    $region28: #{_forward.1} parent=1 // pred_region
      %60 = dma.done [#allocation4], 128
    $region29: #{_forward.1} parent=1 // pred_fallthru
      _
    // Predicated region
    $region30: #{_forward.1} parent=1 // pred_check
      _
    $region31: #{_forward.1} parent=1 // pred_check_branch
      %62 = sbr.rel (0) target = $region33
    $region32: #{_forward.1} parent=1 // pred_region
      %63 = dma.done [#allocation7], 512
    $region33: #{_forward.1} parent=1 // pred_fallthru
      _
    // Predicated region
    $region34: #{_forward.1} parent=1 // pred_check
      _
    $region35: #{_forward.1} parent=1 // pred_check_branch
      %65 = sbr.rel (0) target = $region37
    $region36: #{_forward.1} parent=1 // pred_region
      %66 = dma.done [#allocation7], 1536
    $region37: #{_forward.1} parent=1 // pred_fallthru
      _
    %v67 = vld [vmem:[#allocation3] sm:$0xff]
    %v68 = vld [vmem:[#allocation6] sm:$0xff]
    %v69 = vld [vmem:[#allocation6 + $0x8] sm:$0xff]
    %v70 = vld [vmem:[#allocation6 + $0x10] sm:$0xff]
    %v71 = vld [vmem:[#allocation6 + $0x18] sm:$0xff]
    %v72 = vld [vmem:[%s3] sm:$0x1]
    %v74 = vlaneseq
    %v75 = vshrl.u32 %v74, 7
    %v76 = vsub.s32 0, %v75
    %v77 = vrot.slane %v72, %v76
    %vm79 = vcmask 261120
    %v81 = vsel %vm79, %v67, 0
    %83 = vmatprep.subr.mxu0 0.0
    %84 = vmatpush1.msra.mxu0 %v68
    %85 = vmatprep.subr.mxu0 0.0
    %86 = vmatpush1.msra.mxu0 %v69
    %87 = vmatprep.subr.mxu0 0.0
    %88 = vmatpush1.msra.mxu0 %v70
    %89 = vmatprep.subr.mxu0 0.0
    %90 = vmatpush1.msra.mxu0 %v71
    %91 = vmatprep.subr.mxu0 0.0
    %92 = vmatpush1.msra.mxu0 0.0
    %93 = vmatprep.subr.mxu0 0.0
    %94 = vmatpush1.msra.mxu0 0.0
    %95 = vmatprep.subr.mxu0 0.0
    %96 = vmatpush1.msra.mxu0 0.0
    %97 = vmatprep.subr.mxu0 0.0
    %98 = vmatpush1.msra.mxu0 0.0
    %99 = vmatprep.subr.mxu0 0.0
    %100 = vmatpush1.msra.mxu0 0.0
    %101 = vmatprep.subr.mxu0 0.0
    %102 = vmatpush1.msra.mxu0 0.0
    %103 = vmatprep.subr.mxu0 0.0
    %104 = vmatpush1.msra.mxu0 0.0
    %105 = vmatprep.subr.mxu0 0.0
    %106 = vmatpush1.msra.mxu0 0.0
    %107 = vmatprep.subr.mxu0 0.0
    %108 = vmatpush1.msra.mxu0 0.0
    %109 = vmatprep.subr.mxu0 0.0
    %110 = vmatpush1.msra.mxu0 0.0
    %111 = vmatprep.subr.mxu0 0.0
    %112 = vmatpush1.msra.mxu0 0.0
    %113 = vmatprep.subr.mxu0 0.0
    %114 = vmatpush1.msra.mxu0 0.0
    %115 = vmatprep.subr.mxu0 0.0
    %116 = vmatpush1.msra.mxu0 0.0
    %117 = vmatprep.subr.mxu0 0.0
    %118 = vmatpush1.msra.mxu0 0.0
    %119 = vmatprep.subr.mxu0 0.0
    %120 = vmatpush1.msra.mxu0 0.0
    %121 = vmatprep.subr.mxu0 0.0
    %122 = vmatpush1.msra.mxu0 0.0
    %123 = vmatprep.subr.mxu0 0.0
    %124 = vmatpush1.msra.mxu0 0.0
    %125 = vmatprep.subr.mxu0 0.0
    %126 = vmatpush1.msra.mxu0 0.0
    %127 = vmatprep.subr.mxu0 0.0
    %128 = vmatpush1.msra.mxu0 0.0
    %129 = vmatprep.subr.mxu0 0.0
    %130 = vmatpush1.msra.mxu0 0.0
    %131 = vmatprep.subr.mxu0 0.0
    %132 = vmatpush1.msra.mxu0 0.0
    %133 = vmatprep.subr.mxu0 0.0
    %134 = vmatpush1.msra.mxu0 0.0
    %135 = vmatprep.subr.mxu0 0.0
    %136 = vmatpush1.msra.mxu0 0.0
    %137 = vmatprep.subr.mxu0 0.0
    %138 = vmatpush1.msra.mxu0 0.0
    %139 = vmatprep.subr.mxu0 0.0
    %140 = vmatpush1.msra.mxu0 0.0
    %141 = vmatprep.subr.mxu0 0.0
    %142 = vmatpush1.msra.mxu0 0.0
    %143 = vmatprep.subr.mxu0 0.0
    %144 = vmatpush1.msra.mxu0 0.0
    %145 = vmatprep.subr.mxu0 0.0
    %146 = vmatpush1.msra.mxu0 0.0
    %147 = vmatprep.mubr.f32.mxu0 0.0
    %148 = vmatmul.mubr.f32.gmra.mrb[0].mxu0 %v81
    %v149 = vpop.f32.mrb[0].mxu0
    %v150 = vadd.f32 %v77, %v149
    %v151 = vpop.f32.mrb[0].mxu0
    %152 = vdwg.mxu0
    %v153 = vmax.f32 %v150, 0.0
    %v154 = vld [vmem:[#allocation8] sm:$0xff]
    %v155 = vld [vmem:[#allocation8 + $0x8] sm:$0xff]
    %v156 = vld [vmem:[#allocation8 + $0x10] sm:$0xff]
    %v157 = vld [vmem:[#allocation8 + $0x18] sm:$0xff]
    %v158 = vld [vmem:[#allocation8 + $0x20] sm:$0xff]
    %v159 = vld [vmem:[#allocation8 + $0x28] sm:$0xff]
    %v160 = vld [vmem:[#allocation8 + $0x30] sm:$0xff]
    %v161 = vld [vmem:[#allocation8 + $0x38] sm:$0xff]
    %v162 = vld [vmem:[#allocation8 + $0x40] sm:$0xff]
    %v163 = vld [vmem:[#allocation8 + $0x48] sm:$0xff]
    %v164 = vld [vmem:[#allocation8 + $0x50] sm:$0xff]
    %v165 = vld [vmem:[#allocation8 + $0x58] sm:$0xff]
    %v166 = vld [vmem:[%s5] sm:$0x7]
    %v168 = vlaneseq
    %v169 = vshrl.u32 %v168, 7
    %v170 = vsub.s32 0, %v169
    %v171 = vrot.slane %v166, %v170
    %v172 = vlaneseq
    %v173 = vshrl.u32 %v172, 7
    %v174 = vsub.s32 1, %v173
    %v175 = vrot.slane %v166, %v174
    %v176 = vlaneseq
    %v177 = vshrl.u32 %v176, 7
    %v178 = vsub.s32 2, %v177
    %v179 = vrot.slane %v166, %v178
    %v184 = vsel %vm79, %v153, 0
    %186 = vmatprep.subr.mxu0 %v155
    %187 = vmatpush1.msra.mxu0 %v154
    %188 = vmatprep.subr.mxu0 %v158
    %189 = vmatpush1.msra.mxu0 %v157
    %190 = vmatprep.subr.mxu0 %v161
    %191 = vmatpush1.msra.mxu0 %v160
    %192 = vmatprep.subr.mxu0 %v164
    %193 = vmatpush1.msra.mxu0 %v163
    %194 = vmatprep.subr.mxu0 0.0
    %195 = vmatpush1.msra.mxu0 0.0
    %196 = vmatprep.subr.mxu0 0.0
    %197 = vmatpush1.msra.mxu0 0.0
    %198 = vmatprep.subr.mxu0 0.0
    %199 = vmatpush1.msra.mxu0 0.0
    %200 = vmatprep.subr.mxu0 0.0
    %201 = vmatpush1.msra.mxu0 0.0
    %202 = vmatprep.subr.mxu0 0.0
    %203 = vmatpush1.msra.mxu0 0.0
    %204 = vmatprep.subr.mxu0 0.0
    %205 = vmatpush1.msra.mxu0 0.0
    %206 = vmatprep.subr.mxu0 0.0
    %207 = vmatpush1.msra.mxu0 0.0
    %208 = vmatprep.subr.mxu0 0.0
    %209 = vmatpush1.msra.mxu0 0.0
    %210 = vmatprep.subr.mxu0 0.0
    %211 = vmatpush1.msra.mxu0 0.0
    %212 = vmatprep.subr.mxu0 0.0
    %213 = vmatpush1.msra.mxu0 0.0
    %214 = vmatprep.subr.mxu0 0.0
    %215 = vmatpush1.msra.mxu0 0.0
    %216 = vmatprep.subr.mxu0 0.0
    %217 = vmatpush1.msra.mxu0 0.0
    %218 = vmatprep.subr.mxu0 0.0
    %219 = vmatpush1.msra.mxu0 0.0
    %220 = vmatprep.subr.mxu0 0.0
    %221 = vmatpush1.msra.mxu0 0.0
    %222 = vmatprep.subr.mxu0 0.0
    %223 = vmatpush1.msra.mxu0 0.0
    %224 = vmatprep.subr.mxu0 0.0
    %225 = vmatpush1.msra.mxu0 0.0
    %226 = vmatprep.subr.mxu0 0.0
    %227 = vmatpush1.msra.mxu0 0.0
    %228 = vmatprep.subr.mxu0 0.0
    %229 = vmatpush1.msra.mxu0 0.0
    %230 = vmatprep.subr.mxu0 0.0
    %231 = vmatpush1.msra.mxu0 0.0
    %232 = vmatprep.subr.mxu0 0.0
    %233 = vmatpush1.msra.mxu0 0.0
    %234 = vmatprep.subr.mxu0 0.0
    %235 = vmatpush1.msra.mxu0 0.0
    %236 = vmatprep.subr.mxu0 0.0
    %237 = vmatpush1.msra.mxu0 0.0
    %238 = vmatprep.subr.mxu0 0.0
    %239 = vmatpush1.msra.mxu0 0.0
    %240 = vmatprep.subr.mxu0 0.0
    %241 = vmatpush1.msra.mxu0 0.0
    %242 = vmatprep.subr.mxu0 0.0
    %243 = vmatpush1.msra.mxu0 0.0
    %244 = vmatprep.subr.mxu0 0.0
    %245 = vmatpush1.msra.mxu0 0.0
    %246 = vmatprep.subr.mxu0 0.0
    %247 = vmatpush1.msra.mxu0 0.0
    %248 = vmatprep.subr.mxu0 0.0
    %249 = vmatpush1.msra.mxu0 0.0
    %250 = vmatprep.mubr.f32.mxu0 0.0
    %251 = vmatmul.mubr.f32.gmra.mrb[0].mxu0 %v184
    %v252 = vpop.f32.mrb[0].mxu0
    %v253 = vadd.f32 %v171, %v252
    %v254 = vpop.f32.mrb[0].mxu0
    %v255 = vadd.f32 %v175, %v254
    %256 = vdwg.mxu0
    %257 = vmatprep.subr.mxu0 0.0
    %258 = vmatpush1.msra.mxu0 %v156
    %259 = vmatprep.subr.mxu0 0.0
    %260 = vmatpush1.msra.mxu0 %v159
    %261 = vmatprep.subr.mxu0 0.0
    %262 = vmatpush1.msra.mxu0 %v162
    %263 = vmatprep.subr.mxu0 0.0
    %264 = vmatpush1.msra.mxu0 %v165
    %265 = vmatprep.subr.mxu0 0.0
    %266 = vmatpush1.msra.mxu0 0.0
    %267 = vmatprep.subr.mxu0 0.0
    %268 = vmatpush1.msra.mxu0 0.0
    %269 = vmatprep.subr.mxu0 0.0
    %270 = vmatpush1.msra.mxu0 0.0
    %271 = vmatprep.subr.mxu0 0.0
    %272 = vmatpush1.msra.mxu0 0.0
    %273 = vmatprep.subr.mxu0 0.0
    %274 = vmatpush1.msra.mxu0 0.0
    %275 = vmatprep.subr.mxu0 0.0
    %276 = vmatpush1.msra.mxu0 0.0
    %277 = vmatprep.subr.mxu0 0.0
    %278 = vmatpush1.msra.mxu0 0.0
    %279 = vmatprep.subr.mxu0 0.0
    %280 = vmatpush1.msra.mxu0 0.0
    %281 = vmatprep.subr.mxu0 0.0
    %282 = vmatpush1.msra.mxu0 0.0
    %283 = vmatprep.subr.mxu0 0.0
    %284 = vmatpush1.msra.mxu0 0.0
    %285 = vmatprep.subr.mxu0 0.0
    %286 = vmatpush1.msra.mxu0 0.0
    %287 = vmatprep.subr.mxu0 0.0
    %288 = vmatpush1.msra.mxu0 0.0
    %289 = vmatprep.subr.mxu0 0.0
    %290 = vmatpush1.msra.mxu0 0.0
    %291 = vmatprep.subr.mxu0 0.0
    %292 = vmatpush1.msra.mxu0 0.0
    %293 = vmatprep.subr.mxu0 0.0
    %294 = vmatpush1.msra.mxu0 0.0
    %295 = vmatprep.subr.mxu0 0.0
    %296 = vmatpush1.msra.mxu0 0.0
    %297 = vmatprep.subr.mxu0 0.0
    %298 = vmatpush1.msra.mxu0 0.0
    %299 = vmatprep.subr.mxu0 0.0
    %300 = vmatpush1.msra.mxu0 0.0
    %301 = vmatprep.subr.mxu0 0.0
    %302 = vmatpush1.msra.mxu0 0.0
    %303 = vmatprep.subr.mxu0 0.0
    %304 = vmatpush1.msra.mxu0 0.0
    %305 = vmatprep.subr.mxu0 0.0
    %306 = vmatpush1.msra.mxu0 0.0
    %307 = vmatprep.subr.mxu0 0.0
    %308 = vmatpush1.msra.mxu0 0.0
    %309 = vmatprep.subr.mxu0 0.0
    %310 = vmatpush1.msra.mxu0 0.0
    %311 = vmatprep.subr.mxu0 0.0
    %312 = vmatpush1.msra.mxu0 0.0
    %313 = vmatprep.subr.mxu0 0.0
    %314 = vmatpush1.msra.mxu0 0.0
    %315 = vmatprep.subr.mxu0 0.0
    %316 = vmatpush1.msra.mxu0 0.0
    %317 = vmatprep.subr.mxu0 0.0
    %318 = vmatpush1.msra.mxu0 0.0
    %319 = vmatprep.subr.mxu0 0.0
    %320 = vmatpush1.msra.mxu0 0.0
    %321 = vmatprep.mubr.f32.mxu0 0.0
    %322 = vmatmul.mubr.f32.gmra.mrb[0].mxu0 %v184
    %v323 = vpop.f32.mrb[0].mxu0
    %v324 = vadd.f32 %v179, %v323
    %v325 = vpop.f32.mrb[0].mxu0
    %326 = vdwg.mxu0
    %327 = vst [vmem:[#allocation9] sm:$0xff] %v253
    %328 = vst [vmem:[#allocation9 + $0x8] sm:$0xff] %v255
    %s329 = sld [smem:[#allocation2]]
    %v330 = vstv %s329
    %vm331 = vcmp.gt.f32.partialorder %v324, %v330
    %v332 = vsel %vm331, 1.0, 0.0
    %333 = vst [vmem:[#allocation10] sm:$0xff] %v332
    // Predicated region
    $region38: #{_forward.1} parent=1 // pred_check
      _
    $region39: #{_forward.1} parent=1 // pred_check_branch
      %335 = sbr.rel (0) target = $region41
    $region40: #{_forward.1} parent=1 // pred_region
      %s337 = ssub.s32 256, 256
      %338 = vsyncadd [#allocation5], %s337
      %s340 = sshll.u32 [#allocation9], 4
      %s341 = int_to_ptr.vmem [resolvable:$true] %s340
      %343 = dma.vmem_to_hbm [thread:$0]  %s341, 256, %s6, [#allocation5]
    $region41: #{_forward.1} parent=1 // pred_fallthru
      _
    // Predicated region
    $region42: #{_forward.1} parent=1 // pred_check
      _
    $region43: #{_forward.1} parent=1 // pred_check_branch
      %345 = sbr.rel (0) target = $region45
    $region44: #{_forward.1} parent=1 // pred_region
      %s347 = ssub.s32 128, 128
      %348 = vsyncadd [#allocation11], %s347
      %s350 = sshll.u32 [#allocation10], 4
      %s351 = int_to_ptr.vmem [resolvable:$true] %s350
      %353 = dma.vmem_to_hbm [thread:$0]  %s351, 128, %s7, [#allocation11]
    $region45: #{_forward.1} parent=1 // pred_fallthru
      _
    // Predicated region
    $region46: #{_forward.1} parent=1 // pred_check
      _
    $region47: #{_forward.1} parent=1 // pred_check_branch
      %355 = sbr.rel (0) target = $region49
    $region48: #{_forward.1} parent=1 // pred_region
      %356 = dma.done [#allocation5], 256
    $region49: #{_forward.1} parent=1 // pred_fallthru
      _
    // Predicated region
    $region50: #{_forward.1} parent=1 // pred_check
      _
    $region51: #{_forward.1} parent=1 // pred_check_branch
      %358 = sbr.rel (0) target = $region53
    $region52: #{_forward.1} parent=1 // pred_region
      %359 = dma.done [#allocation11], 128
    $region53: #{_forward.1} parent=1 // pred_fallthru
      _
    %360 = vsyncpa [#allocation4], 1
    %361 = vsyncpa [#allocation7], 1
    %362 = vsyncpa [#allocation5], 1
    %363 = vsyncpa [#allocation11], 1

</llo_original>
